<compile_context>
chip_gen: v5e
topology: v5e:2x2
jax: 0.10.0
libtpu: 0.0.40
codegen_flags: <defaults>
</compile_context>

<pallas_src>
import functools

import jax
import jax.numpy as jnp
from jax.experimental import pallas as pl
from jax.experimental.pallas import tpu as pltpu


def _link_predictor_kernel(*refs, n_hidden, matmul_dtype):
    """refs = (x_i, x_j, W0^T, b0, ..., W_{L-2}^T, b_{L-2}, W_last_row, b_last, out).

    Hidden weights are pre-transposed to [in, out]; the last-layer weight keeps
    the torch [1, hidden] row layout so the final matmul emits a lane-dense
    [1, tile_m] row directly.  b_last lives in SMEM as a (1,1) scalar.
    """
    x_i_ref, x_j_ref = refs[0], refs[1]
    o_ref = refs[-1]                       # block (1, 1, tile_m)
    wb = refs[2:-1]

    # Elementwise feature product on the VPU, in f32 (v5e VPU has no bf16; on
    # v6e/v7x the upcasts ride spare VALU slots -- this kernel is not VPU-bound).
    x = x_i_ref[...].astype(jnp.float32) * x_j_ref[...].astype(jnp.float32)

    # Hidden layers: bf16 (or f32) MXU operands, f32 accumulation, f32 bias+ReLU.
    for l in range(n_hidden):
        w = wb[2 * l][...]                 # [in_l, out_l], matmul_dtype
        b = wb[2 * l + 1][...]             # [1, out_l], f32 (VMEM)
        h = jnp.dot(x.astype(matmul_dtype), w,
                    preferred_element_type=jnp.float32) + b
        x = jnp.maximum(h, 0.0)            # activations stay f32
        # TODO(synk): F.dropout(training=True) not implemented; inference-mode
        # identity is used (pltpu.prng_* could supply a mask for training).

    # Last layer, out_channels == 1, computed lane-dense:
    #   [1, H] contracted with [tile_m, H] over H  ->  [1, tile_m]  (trans-B).
    w_row = wb[-2][...]                    # [1, hidden], matmul_dtype
    b_last = wb[-1][0, 0]                  # scalar f32 from SMEM
    logits = jax.lax.dot_general(
        w_row, x.astype(matmul_dtype),
        dimension_numbers=(((1,), (1,)), ((), ())),
        preferred_element_type=jnp.float32,
    ) + b_last                             # [1, tile_m], f32

    o_ref[0] = jax.nn.sigmoid(logits).astype(o_ref.dtype)


def _num_tensorcores():
    """Best-effort TensorCore count of the local device (megacore detection)."""
    try:
        d = jax.devices()[0]
        for attr in ("num_cores", "core_count"):
            v = getattr(d, attr, None)
            if isinstance(v, int) and v > 0:
                return v
        kind = str(getattr(d, "device_kind", "")).lower()
        if any(tag in kind for tag in ("v4", "v5p", "v7")):
            return 2
    except Exception:
        pass
    return 1


def _choose_tile_m(n_rows, bytes_per_row, num_cores=1,
                   vmem_budget=20 * 1024 * 1024):
    """Largest row tile dividing N within the VMEM budget.

    On megacore chips prefer the largest tile whose grid_m is a multiple of the
    TensorCore count (keeps every core busy via the "parallel" axis); on
    single-TC chips the grid is a serial loop, so grid_m=1 is best.
    """
    assert n_rows % 128 == 0, "pad N to a multiple of 128"
    cands = [t for t in (16384, 8192, 4096, 2048, 1024, 512, 256, 128)
             if n_rows % t == 0 and t * bytes_per_row <= vmem_budget]
    if not cands:
        cands = [128]
    if num_cores >= 2:
        for t in cands:
            if (n_rows // t) % num_cores == 0:
                return t
        for t in cands:
            if n_rows // t >= num_cores:
                return t
    return cands[0]


def link_predictor_forward(x_i, x_j, weights, biases, *, tile_m=None,
                           matmul_dtype=jnp.bfloat16):
    """weights/biases in torch layout: weights[l] is [out_l, in_l], biases[l] is [out_l].

    x_i / x_j are consumed in their HBM dtype (pass bf16 inputs to halve input
    traffic).  matmul_dtype controls the MXU operand dtype only; accumulation,
    bias, ReLU and sigmoid are always f32.  Use matmul_dtype=jnp.float32 for a
    bit-accurate (but slower on the MXU) path.
    """
    N, in_ch = x_i.shape
    assert x_j.shape == x_i.shape
    hidden = int(weights[0].shape[0])
    out_ch = int(weights[-1].shape[0])
    # TODO(synk): only out_channels == 1 (the LinkPredictor use case) gets the
    # lane-dense output path; out_ch > 1 would need the column-output variant.
    assert out_ch == 1, "lane-dense kernel specialized to out_channels == 1"

    in_item = jnp.dtype(x_i.dtype).itemsize
    if tile_m is None:
        # Rough per-row VMEM cost: 2 inputs x 2 pipeline buffers + f32 temps.
        bytes_per_row = 4 * in_ch * in_item + 4 * (in_ch + 2 * hidden) + 16
        tile_m = _choose_tile_m(N, bytes_per_row, num_cores=_num_tensorcores())
    assert N % tile_m == 0, "pad N to a multiple of tile_m"
    grid_m = N // tile_m

    in_specs = [
        pl.BlockSpec((tile_m, in_ch), lambda i: (i, 0)),   # x_i row tile
        pl.BlockSpec((tile_m, in_ch), lambda i: (i, 0)),   # x_j row tile
    ]
    wb_args = []
    # Hidden layers: transpose to [in, out] in matmul_dtype; biases [1, out] f32.
    for w, b in zip(weights[:-1], biases[:-1]):
        wt = jnp.asarray(w).T.astype(matmul_dtype)
        b2 = jnp.asarray(b).reshape(1, -1).astype(jnp.float32)
        in_specs.append(pl.BlockSpec(wt.shape, lambda i: (0, 0)))
        in_specs.append(pl.BlockSpec(b2.shape, lambda i: (0, 0)))
        wb_args += [wt, b2]
    # Last layer: keep torch [1, hidden] row layout; scalar bias goes to SMEM.
    w_last = jnp.asarray(weights[-1]).astype(matmul_dtype)
    b_last = jnp.asarray(biases[-1]).reshape(1, 1).astype(jnp.float32)
    in_specs.append(pl.BlockSpec(w_last.shape, lambda i: (0, 0)))
    in_specs.append(pl.BlockSpec(memory_space=pltpu.MemorySpace.SMEM))
    wb_args += [w_last, b_last]

    # Lane-dense output slab: (grid_m, 1, tile_m), block (1, 1, tile_m).
    out_spec = pl.BlockSpec((1, 1, tile_m), lambda i: (i, 0, 0))

    flops = 2 * N * sum(int(jnp.asarray(w).size) for w in weights) + N * in_ch
    bytes_accessed = (2 * N * in_ch * in_item + N * 4
                      + sum(int(a.size) * a.dtype.itemsize for a in wb_args))
    cost = pl.CostEstimate(flops=int(flops), transcendentals=int(N),
                           bytes_accessed=int(bytes_accessed))

    kernel = functools.partial(_link_predictor_kernel,
                               n_hidden=len(weights) - 1,
                               matmul_dtype=matmul_dtype)

    out_rows = pl.pallas_call(
        kernel,
        out_shape=jax.ShapeDtypeStruct((grid_m, 1, tile_m), jnp.float32),
        grid_spec=pltpu.PrefetchScalarGridSpec(
            num_scalar_prefetch=0,
            grid=(grid_m,),
            in_specs=in_specs,
            out_specs=out_spec,
        ),
        compiler_params=pltpu.CompilerParams(
            dimension_semantics=("parallel",),
            # Large f32 row tiles (>= 8192 rows) exceed v5e's 16 MiB scoped
            # default; 32 MiB is safe on every generation (v7x default is 32).
            vmem_limit_bytes=32 * 1024 * 1024,
        ),
        cost_estimate=cost,
    )(x_i, x_j, *wb_args)

    return out_rows.reshape(N, 1)


def init_params(key, in_channels, hidden_channels, out_channels, num_layers):
    """Deterministic synthetic init matching the torch module's layout:
    weights[l]: [out_l, in_l], biases[l]: [out_l]."""
    dims = [in_channels] + [hidden_channels] * (num_layers - 1) + [out_channels]
    weights, biases = [], []
    for l in range(num_layers):
        key, kw, kb = jax.random.split(key, 3)
        fan_in, fan_out = dims[l], dims[l + 1]
        bound = 1.0 / jnp.sqrt(fan_in)
        w = jax.random.uniform(kw, (fan_out, fan_in), jnp.float32, -bound, bound)
        b = jax.random.uniform(kb, (fan_out,), jnp.float32, -bound, bound)
        weights.append(w)
        biases.append(b)
    return weights, biases


def reference_forward(x_i, x_j, weights, biases):
    x = (x_i * x_j).astype(jnp.float32)
    for l, (w, b) in enumerate(zip(weights, biases)):
        x = x @ w.T + b
        if l < len(weights) - 1:
            x = jnp.maximum(x, 0.0)
    return jax.nn.sigmoid(x)


if __name__ == "__main__":
    # Small shapes consistent with the module: edges N=256, in=32, hidden=64,
    # out=1, num_layers=3, dropout (eval -> identity).
    N, IN, HID, OUT, NUM_LAYERS = 256, 32, 64, 1, 3

    key = jax.random.PRNGKey(0)
    k_xi, k_xj, k_p = jax.random.split(key, 3)
    x_i = jax.random.normal(k_xi, (N, IN), jnp.float32)
    x_j = jax.random.normal(k_xj, (N, IN), jnp.float32)

    weights, biases = init_params(k_p, IN, HID, OUT, NUM_LAYERS)
    ref = reference_forward(x_i, x_j, weights, biases)

    # Exact f32 MXU path (bit-accurate check vs reference).
    out_f32 = jax.block_until_ready(
        link_predictor_forward(x_i, x_j, weights, biases,
                               matmul_dtype=jnp.float32))
    assert out_f32.shape == (N, OUT)
    assert jnp.allclose(out_f32, ref, atol=1e-5, rtol=1e-5), "f32 mismatch vs reference"

    # Default path: f32 inputs, bf16 MXU operands, f32 accumulation/activations.
    out = jax.block_until_ready(link_predictor_forward(x_i, x_j, weights, biases))
    assert out.shape == (N, OUT)
    assert jnp.allclose(out, ref, atol=2e-2, rtol=2e-2), "bf16-MXU mismatch vs reference"

    # bf16 inputs at rest (v6e/v7x/v5e HBM-traffic optimization): no wrapper
    # convert -- the kernel reads bf16 and upcasts for the f32 product.
    out_bf16_in = jax.block_until_ready(
        link_predictor_forward(x_i.astype(jnp.bfloat16),
                               x_j.astype(jnp.bfloat16),
                               weights, biases))
    assert out_bf16_in.shape == (N, OUT)
    assert jnp.allclose(out_bf16_in, ref, atol=2e-2, rtol=2e-2), \
        "bf16-input mismatch vs reference"

    print("KERNEL_OK")
</pallas_src>

<mosaic_0001>
module attributes {stable_mosaic.version = 11 : i64} {
  func.func @_link_predictor_kernel(%arg0: i32, %arg1: memref<256x32xf32, #tpu.memory_space<vmem>>, %arg2: memref<256x32xf32, #tpu.memory_space<vmem>>, %arg3: memref<32x64xf32, #tpu.memory_space<vmem>>, %arg4: memref<1x64xf32, #tpu.memory_space<vmem>>, %arg5: memref<64x64xf32, #tpu.memory_space<vmem>>, %arg6: memref<1x64xf32, #tpu.memory_space<vmem>>, %arg7: memref<1x64xf32, #tpu.memory_space<vmem>>, %arg8: memref<1x1xf32, #tpu.memory_space<smem>>, %arg9: memref<1x1x256xf32, #tpu.memory_space<vmem>>) attributes {dimension_semantics = [#tpu.dimension_semantics<parallel>], iteration_bounds = array<i64: 1>, scalar_prefetch = 0 : i64, scratch_operands = 0 : i64, tpu.core_type = #tpu.core_type<tc>, window_params = [{transform_indices = @transform_0, window_bounds = array<i64: 256, 32>}, {transform_indices = @transform_1, window_bounds = array<i64: 256, 32>}, {pipeline_mode = #tpu.pipeline_mode<synchronous>, transform_indices = @transform_2, window_bounds = array<i64: 32, 64>}, {pipeline_mode = #tpu.pipeline_mode<synchronous>, transform_indices = @transform_3, window_bounds = array<i64: 1, 64>}, {pipeline_mode = #tpu.pipeline_mode<synchronous>, transform_indices = @transform_4, window_bounds = array<i64: 64, 64>}, {pipeline_mode = #tpu.pipeline_mode<synchronous>, transform_indices = @transform_5, window_bounds = array<i64: 1, 64>}, {pipeline_mode = #tpu.pipeline_mode<synchronous>, transform_indices = @transform_6, window_bounds = array<i64: 1, 64>}, {transform_indices = @transform_7, window_bounds = array<i64: 1, 1>}, {transform_indices = @transform_8, window_bounds = array<i64: 1, 1, 256>}]} {
    %c0 = arith.constant 0 : index
    %c0_0 = arith.constant 0 : index
    %0 = vector.load %arg1[%c0, %c0_0] : memref<256x32xf32, #tpu.memory_space<vmem>>, vector<256x32xf32>
    %c0_1 = arith.constant 0 : index
    %c0_2 = arith.constant 0 : index
    %1 = vector.load %arg2[%c0_1, %c0_2] : memref<256x32xf32, #tpu.memory_space<vmem>>, vector<256x32xf32>
    %2 = arith.mulf %0, %1 : vector<256x32xf32>
    %c0_3 = arith.constant 0 : index
    %c0_4 = arith.constant 0 : index
    %3 = vector.load %arg3[%c0_3, %c0_4] : memref<32x64xf32, #tpu.memory_space<vmem>>, vector<32x64xf32>
    %c0_5 = arith.constant 0 : index
    %c0_6 = arith.constant 0 : index
    %4 = vector.load %arg4[%c0_5, %c0_6] : memref<1x64xf32, #tpu.memory_space<vmem>>, vector<1x64xf32>
    %cst = arith.constant dense<0.000000e+00> : vector<256x64xf32>
    %5 = tpu.matmul %2, %3, %cst {dimension_numbers = #tpu.dot_dimension_numbers<[1], [0], [0], [1], [0, 0, 1, 1], [], []>} : vector<256x32xf32>, vector<32x64xf32>, vector<256x64xf32> -> vector<256x64xf32>
    %6 = vector.broadcast %4 : vector<1x64xf32> to vector<256x64xf32>
    %7 = arith.addf %5, %6 : vector<256x64xf32>
    %cst_7 = arith.constant 0.000000e+00 : f32
    %8 = vector.broadcast %cst_7 : f32 to vector<256x64xf32>
    %9 = arith.maximumf %7, %8 : vector<256x64xf32>
    %c0_8 = arith.constant 0 : index
    %c0_9 = arith.constant 0 : index
    %10 = vector.load %arg5[%c0_8, %c0_9] : memref<64x64xf32, #tpu.memory_space<vmem>>, vector<64x64xf32>
    %c0_10 = arith.constant 0 : index
    %c0_11 = arith.constant 0 : index
    %11 = vector.load %arg6[%c0_10, %c0_11] : memref<1x64xf32, #tpu.memory_space<vmem>>, vector<1x64xf32>
    %cst_12 = arith.constant dense<0.000000e+00> : vector<256x64xf32>
    %12 = tpu.matmul %9, %10, %cst_12 {dimension_numbers = #tpu.dot_dimension_numbers<[1], [0], [0], [1], [0, 0, 1, 1], [], []>} : vector<256x64xf32>, vector<64x64xf32>, vector<256x64xf32> -> vector<256x64xf32>
    %13 = vector.broadcast %11 : vector<1x64xf32> to vector<256x64xf32>
    %14 = arith.addf %12, %13 : vector<256x64xf32>
    %cst_13 = arith.constant 0.000000e+00 : f32
    %15 = vector.broadcast %cst_13 : f32 to vector<256x64xf32>
    %16 = arith.maximumf %14, %15 : vector<256x64xf32>
    %c0_14 = arith.constant 0 : index
    %c0_15 = arith.constant 0 : index
    %17 = vector.load %arg7[%c0_14, %c0_15] : memref<1x64xf32, #tpu.memory_space<vmem>>, vector<1x64xf32>
    %c0_16 = arith.constant 0 : index
    %c0_17 = arith.constant 0 : index
    %18 = memref.load %arg8[%c0_16, %c0_17] : memref<1x1xf32, #tpu.memory_space<smem>>
    %cst_18 = arith.constant dense<0.000000e+00> : vector<1x256xf32>
    %19 = tpu.matmul %17, %16, %cst_18 {dimension_numbers = #tpu.dot_dimension_numbers<[1], [1], [0], [0], [0, 0, 1, 0], [], []>} : vector<1x64xf32>, vector<256x64xf32>, vector<1x256xf32> -> vector<1x256xf32>
    %20 = vector.broadcast %18 : f32 to vector<1x256xf32>
    %21 = arith.addf %19, %20 : vector<1x256xf32>
    %22 = arith.negf %21 : vector<1x256xf32>
    %23 = math.exp %22 : vector<1x256xf32>
    %cst_19 = arith.constant 1.000000e+00 : f32
    %24 = vector.broadcast %cst_19 : f32 to vector<1x256xf32>
    %25 = arith.addf %24, %23 : vector<1x256xf32>
    %26 = arith.divf %24, %25 : vector<1x256xf32>
    %c0_20 = arith.constant 0 : index
    %c0_21 = arith.constant 0 : index
    %c0_22 = arith.constant 0 : index
    %27 = vector.load %arg9[%c0_20, %c0_21, %c0_22] : memref<1x1x256xf32, #tpu.memory_space<vmem>>, vector<1x1x256xf32>
    %28 = vector.shape_cast %27 : vector<1x1x256xf32> to vector<1x256xf32>
    %29 = vector.shape_cast %26 : vector<1x256xf32> to vector<1x1x256xf32>
    tpu.vector_store %arg9[%c0_20, %c0_21, %c0_22], %29 {strides = array<i32>} : memref<1x1x256xf32, #tpu.memory_space<vmem>>, vector<1x1x256xf32>,
    return
  }
  func.func @transform_0(%arg0: i32) -> (i32, i32) {
    %c0_i32 = arith.constant 0 : i32
    %c0_i32_0 = arith.constant 0 : i32
    return %arg0, %c0_i32 : i32, i32
  }
  func.func @transform_1(%arg0: i32) -> (i32, i32) {
    %c0_i32 = arith.constant 0 : i32
    %c0_i32_0 = arith.constant 0 : i32
    return %arg0, %c0_i32 : i32, i32
  }
  func.func @transform_2(%arg0: i32) -> (i32, i32) {
    %c0_i32 = arith.constant 0 : i32
    %c0_i32_0 = arith.constant 0 : i32
    %c0_i32_1 = arith.constant 0 : i32
    return %c0_i32, %c0_i32_0 : i32, i32
  }
  func.func @transform_3(%arg0: i32) -> (i32, i32) {
    %c0_i32 = arith.constant 0 : i32
    %c0_i32_0 = arith.constant 0 : i32
    %c0_i32_1 = arith.constant 0 : i32
    return %c0_i32, %c0_i32_0 : i32, i32
  }
  func.func @transform_4(%arg0: i32) -> (i32, i32) {
    %c0_i32 = arith.constant 0 : i32
    %c0_i32_0 = arith.constant 0 : i32
    %c0_i32_1 = arith.constant 0 : i32
    return %c0_i32, %c0_i32_0 : i32, i32
  }
  func.func @transform_5(%arg0: i32) -> (i32, i32) {
    %c0_i32 = arith.constant 0 : i32
    %c0_i32_0 = arith.constant 0 : i32
    %c0_i32_1 = arith.constant 0 : i32
    return %c0_i32, %c0_i32_0 : i32, i32
  }
  func.func @transform_6(%arg0: i32) -> (i32, i32) {
    %c0_i32 = arith.constant 0 : i32
    %c0_i32_0 = arith.constant 0 : i32
    %c0_i32_1 = arith.constant 0 : i32
    return %c0_i32, %c0_i32_0 : i32, i32
  }
  func.func @transform_7(%arg0: i32) -> (i32, i32) {
    %c0_i32 = arith.constant 0 : i32
    %c0_i32_0 = arith.constant 0 : i32
    %c0_i32_1 = arith.constant 0 : i32
    return %c0_i32, %c0_i32_0 : i32, i32
  }
  func.func @transform_8(%arg0: i32) -> (i32, i32, i32) {
    %c0_i32 = arith.constant 0 : i32
    %c0_i32_0 = arith.constant 0 : i32
    %c0_i32_1 = arith.constant 0 : i32
    return %arg0, %c0_i32, %c0_i32_0 : i32, i32, i32
  }
}

</mosaic_0001>

<llo_original>
// kernel: tpu_custom_call.1
$region0: #{tpu_custom_call.1}
  #allocation0 [shape = 'u32[]', space=smem, size = 0x4, offset = 0x4, fixed_abs, tag = 'smem constant byte address 0x4 - core index']
  #allocation1 [shape = 'u32[72,128]{1,0:T(1,128)}', space=vmem, size = 0x9000, scoped, tag = 'internal scratch']
  #allocation2 [shape = 'f32[1,1]{1,0:T(1,128)S(6)}', space=smem, size = 0x200, scoped, tag = 'scoped memory for tpu_custom_call.1']
  %s0 = inlined_call_operand.vmem [shape: f32[256,32], index: 0, kind: input, shape index: {}]
  %s1 = inlined_call_operand.vmem [shape: f32[256,32], index: 1, kind: input, shape index: {}]
  %s2 = inlined_call_operand.vmem [shape: f32[32,64], index: 2, kind: input, shape index: {}]
  %s3 = inlined_call_operand.vmem [shape: f32[1,64], index: 3, kind: input, shape index: {}]
  %s4 = inlined_call_operand.vmem [shape: f32[64,64], index: 4, kind: input, shape index: {}]
  %s5 = inlined_call_operand.vmem [shape: f32[1,64], index: 5, kind: input, shape index: {}]
  %s6 = inlined_call_operand.vmem [shape: f32[1,64], index: 6, kind: input, shape index: {}]
  %s7 = inlined_call_operand.<no memory space> [shape: f32[1,1], index: 7, kind: input, shape index: {}]
  %s8 = inlined_call_operand.hbm [shape: f32[1,1,256], index: 8, kind: output, shape index: {}]
  %s9 = sld [smem:[#allocation0]]
  $region42: #{tpu_custom_call.1} parent=0
    _
  %s11 = ssub.s32 1, %s9
  %s12 = scalar_select 0, %s11, %s9
  %13 = sst [smem:[#allocation2]] %s7
  $region1: #{tpu_custom_call.1} parent=0
    #allocation3 [shape = 'u8[1024]{0}', space=vmem, size = 0x400, scoped, tag = 'output window, operand 0, single buffered']
    #allocation4 [shape = 's32[1]{0}', space=sflag, size = 0x4, scoped, tag = 'scoped memory for tpu_custom_call.1']
    %14 = vsyncpa [#allocation4], 0
    // Predicated region
    $region2: #{tpu_custom_call.1} parent=1 // pred_check
      _
    $region3: #{tpu_custom_call.1} parent=1 // pred_check_branch
      %16 = sbr.rel (0) target = $region5
    $region4: #{tpu_custom_call.1} parent=1 // pred_region
      _
    $region5: #{tpu_custom_call.1} parent=1 // pred_fallthru
      _
    // Predicated region
    $region6: #{tpu_custom_call.1} parent=1 // pred_check
      _
    $region7: #{tpu_custom_call.1} parent=1 // pred_check_branch
      %18 = sbr.rel (0) target = $region9
    $region8: #{tpu_custom_call.1} parent=1 // pred_region
      _
    $region9: #{tpu_custom_call.1} parent=1 // pred_fallthru
      _
    // Predicated region
    $region10: #{tpu_custom_call.1} parent=1 // pred_check
      _
    $region11: #{tpu_custom_call.1} parent=1 // pred_check_branch
      %20 = sbr.rel (0) target = $region13
    $region12: #{tpu_custom_call.1} parent=1 // pred_region
      _
    $region13: #{tpu_custom_call.1} parent=1 // pred_fallthru
      _
    // Predicated region
    $region14: #{tpu_custom_call.1} parent=1 // pred_check
      _
    $region15: #{tpu_custom_call.1} parent=1 // pred_check_branch
      %22 = sbr.rel (0) target = $region17
    $region16: #{tpu_custom_call.1} parent=1 // pred_region
      _
    $region17: #{tpu_custom_call.1} parent=1 // pred_fallthru
      _
    // Predicated region
    $region18: #{tpu_custom_call.1} parent=1 // pred_check
      _
    $region19: #{tpu_custom_call.1} parent=1 // pred_check_branch
      %24 = sbr.rel (0) target = $region21
    $region20: #{tpu_custom_call.1} parent=1 // pred_region
      _
    $region21: #{tpu_custom_call.1} parent=1 // pred_fallthru
      _
    // Predicated region
    $region22: #{tpu_custom_call.1} parent=1 // pred_check
      _
    $region23: #{tpu_custom_call.1} parent=1 // pred_check_branch
      %26 = sbr.rel (0) target = $region25
    $region24: #{tpu_custom_call.1} parent=1 // pred_region
      _
    $region25: #{tpu_custom_call.1} parent=1 // pred_fallthru
      _
    // Predicated region
    $region26: #{tpu_custom_call.1} parent=1 // pred_check
      _
    $region27: #{tpu_custom_call.1} parent=1 // pred_check_branch
      %28 = sbr.rel (0) target = $region29
    $region28: #{tpu_custom_call.1} parent=1 // pred_region
      _
    $region29: #{tpu_custom_call.1} parent=1 // pred_fallthru
      _
    // Predicated region
    $region30: #{tpu_custom_call.1} parent=1 // pred_check
      _
    $region31: #{tpu_custom_call.1} parent=1 // pred_check_branch
      %30 = sbr.rel (0) target = $region33
    $region32: #{tpu_custom_call.1} parent=1 // pred_region
      _
    $region33: #{tpu_custom_call.1} parent=1 // pred_fallthru
      _
    %v31 = vld [vmem:[%s0] sm:$0xff]
    %v32 = vld [vmem:[%s0 + $0x8] sm:$0xff]
    %v33 = vld [vmem:[%s0 + $0x10] sm:$0xff]
    %v34 = vld [vmem:[%s0 + $0x18] sm:$0xff]
    %v35 = vld [vmem:[%s0 + $0x20] sm:$0xff]
    %v36 = vld [vmem:[%s0 + $0x28] sm:$0xff]
    %v37 = vld [vmem:[%s0 + $0x30] sm:$0xff]
    %v38 = vld [vmem:[%s0 + $0x38] sm:$0xff]
    %v39 = vld [vmem:[%s0 + $0x40] sm:$0xff]
    %v40 = vld [vmem:[%s0 + $0x48] sm:$0xff]
    %v41 = vld [vmem:[%s0 + $0x50] sm:$0xff]
    %v42 = vld [vmem:[%s0 + $0x58] sm:$0xff]
    %v43 = vld [vmem:[%s0 + $0x60] sm:$0xff]
    %v44 = vld [vmem:[%s0 + $0x68] sm:$0xff]
    %v45 = vld [vmem:[%s0 + $0x70] sm:$0xff]
    %v46 = vld [vmem:[%s0 + $0x78] sm:$0xff]
    %v47 = vld [vmem:[%s0 + $0x80] sm:$0xff]
    %v48 = vld [vmem:[%s0 + $0x88] sm:$0xff]
    %v49 = vld [vmem:[%s0 + $0x90] sm:$0xff]
    %v50 = vld [vmem:[%s0 + $0x98] sm:$0xff]
    %v51 = vld [vmem:[%s0 + $0xa0] sm:$0xff]
    %v52 = vld [vmem:[%s0 + $0xa8] sm:$0xff]
    %v53 = vld [vmem:[%s0 + $0xb0] sm:$0xff]
    %v54 = vld [vmem:[%s0 + $0xb8] sm:$0xff]
    %v55 = vld [vmem:[%s0 + $0xc0] sm:$0xff]
    %v56 = vld [vmem:[%s0 + $0xc8] sm:$0xff]
    %v57 = vld [vmem:[%s0 + $0xd0] sm:$0xff]
    %v58 = vld [vmem:[%s0 + $0xd8] sm:$0xff]
    %v59 = vld [vmem:[%s0 + $0xe0] sm:$0xff]
    %v60 = vld [vmem:[%s0 + $0xe8] sm:$0xff]
    %v61 = vld [vmem:[%s0 + $0xf0] sm:$0xff]
    %v62 = vld [vmem:[%s0 + $0xf8] sm:$0xff]
    %v63 = vld [vmem:[%s1] sm:$0xff]
    %v64 = vld [vmem:[%s1 + $0x8] sm:$0xff]
    %v65 = vld [vmem:[%s1 + $0x10] sm:$0xff]
    %v66 = vld [vmem:[%s1 + $0x18] sm:$0xff]
    %v67 = vld [vmem:[%s1 + $0x20] sm:$0xff]
    %v68 = vld [vmem:[%s1 + $0x28] sm:$0xff]
    %v69 = vld [vmem:[%s1 + $0x30] sm:$0xff]
    %v70 = vld [vmem:[%s1 + $0x38] sm:$0xff]
    %v71 = vld [vmem:[%s1 + $0x40] sm:$0xff]
    %v72 = vld [vmem:[%s1 + $0x48] sm:$0xff]
    %v73 = vld [vmem:[%s1 + $0x50] sm:$0xff]
    %v74 = vld [vmem:[%s1 + $0x58] sm:$0xff]
    %v75 = vld [vmem:[%s1 + $0x60] sm:$0xff]
    %v76 = vld [vmem:[%s1 + $0x68] sm:$0xff]
    %v77 = vld [vmem:[%s1 + $0x70] sm:$0xff]
    %v78 = vld [vmem:[%s1 + $0x78] sm:$0xff]
    %v79 = vld [vmem:[%s1 + $0x80] sm:$0xff]
    %v80 = vld [vmem:[%s1 + $0x88] sm:$0xff]
    %v81 = vld [vmem:[%s1 + $0x90] sm:$0xff]
    %v82 = vld [vmem:[%s1 + $0x98] sm:$0xff]
    %v83 = vld [vmem:[%s1 + $0xa0] sm:$0xff]
    %v84 = vld [vmem:[%s1 + $0xa8] sm:$0xff]
    %v85 = vld [vmem:[%s1 + $0xb0] sm:$0xff]
    %v86 = vld [vmem:[%s1 + $0xb8] sm:$0xff]
    %v87 = vld [vmem:[%s1 + $0xc0] sm:$0xff]
    %v88 = vld [vmem:[%s1 + $0xc8] sm:$0xff]
    %v89 = vld [vmem:[%s1 + $0xd0] sm:$0xff]
    %v90 = vld [vmem:[%s1 + $0xd8] sm:$0xff]
    %v91 = vld [vmem:[%s1 + $0xe0] sm:$0xff]
    %v92 = vld [vmem:[%s1 + $0xe8] sm:$0xff]
    %v93 = vld [vmem:[%s1 + $0xf0] sm:$0xff]
    %v94 = vld [vmem:[%s1 + $0xf8] sm:$0xff]
    %v95 = vmul.f32 %v31, %v63
    %v96 = vmul.f32 %v32, %v64
    %v97 = vmul.f32 %v33, %v65
    %v98 = vmul.f32 %v34, %v66
    %v99 = vmul.f32 %v35, %v67
    %v100 = vmul.f32 %v36, %v68
    %v101 = vmul.f32 %v37, %v69
    %v102 = vmul.f32 %v38, %v70
    %v103 = vmul.f32 %v39, %v71
    %v104 = vmul.f32 %v40, %v72
    %v105 = vmul.f32 %v41, %v73
    %v106 = vmul.f32 %v42, %v74
    %v107 = vmul.f32 %v43, %v75
    %v108 = vmul.f32 %v44, %v76
    %v109 = vmul.f32 %v45, %v77
    %v110 = vmul.f32 %v46, %v78
    %v111 = vmul.f32 %v47, %v79
    %v112 = vmul.f32 %v48, %v80
    %v113 = vmul.f32 %v49, %v81
    %v114 = vmul.f32 %v50, %v82
    %v115 = vmul.f32 %v51, %v83
    %v116 = vmul.f32 %v52, %v84
    %v117 = vmul.f32 %v53, %v85
    %v118 = vmul.f32 %v54, %v86
    %v119 = vmul.f32 %v55, %v87
    %v120 = vmul.f32 %v56, %v88
    %v121 = vmul.f32 %v57, %v89
    %v122 = vmul.f32 %v58, %v90
    %v123 = vmul.f32 %v59, %v91
    %v124 = vmul.f32 %v60, %v92
    %v125 = vmul.f32 %v61, %v93
    %v126 = vmul.f32 %v62, %v94
    %v127 = vld [vmem:[%s2] sm:$0xff]
    %v128 = vld [vmem:[%s2 + $0x8] sm:$0xff]
    %v129 = vld [vmem:[%s2 + $0x10] sm:$0xff]
    %v130 = vld [vmem:[%s2 + $0x18] sm:$0xff]
    %v131 = vld [vmem:[%s3] sm:$0x1]
    %v133 = vperm.slane %v131, 0
    %vm135 = vcmask 261120
    %v137 = vsel %vm135, %v95, 0
    %v140 = vsel %vm135, %v96, 0
    %v143 = vsel %vm135, %v97, 0
    %v146 = vsel %vm135, %v98, 0
    %v149 = vsel %vm135, %v99, 0
    %v152 = vsel %vm135, %v100, 0
    %v155 = vsel %vm135, %v101, 0
    %v158 = vsel %vm135, %v102, 0
    %v161 = vsel %vm135, %v103, 0
    %v164 = vsel %vm135, %v104, 0
    %v167 = vsel %vm135, %v105, 0
    %v170 = vsel %vm135, %v106, 0
    %v173 = vsel %vm135, %v107, 0
    %v176 = vsel %vm135, %v108, 0
    %v179 = vsel %vm135, %v109, 0
    %v182 = vsel %vm135, %v110, 0
    %v185 = vsel %vm135, %v111, 0
    %v188 = vsel %vm135, %v112, 0
    %v191 = vsel %vm135, %v113, 0
    %v194 = vsel %vm135, %v114, 0
    %v197 = vsel %vm135, %v115, 0
    %v200 = vsel %vm135, %v116, 0
    %v203 = vsel %vm135, %v117, 0
    %v206 = vsel %vm135, %v118, 0
    %v209 = vsel %vm135, %v119, 0
    %v212 = vsel %vm135, %v120, 0
    %v215 = vsel %vm135, %v121, 0
    %v218 = vsel %vm135, %v122, 0
    %v221 = vsel %vm135, %v123, 0
    %v224 = vsel %vm135, %v124, 0
    %v227 = vsel %vm135, %v125, 0
    %v230 = vsel %vm135, %v126, 0
    %232 = vmatpush.msra.mxu0 0.0
    %233 = vmatpush.msra.mxu0 0.0
    %234 = vmatpush.msra.mxu0 0.0
    %235 = vmatpush.msra.mxu0 0.0
    %236 = vmatpush.msra.mxu0 0.0
    %237 = vmatpush.msra.mxu0 0.0
    %238 = vmatpush.msra.mxu0 0.0
    %239 = vmatpush.msra.mxu0 0.0
    %240 = vmatpush.msra.mxu0 0.0
    %241 = vmatpush.msra.mxu0 0.0
    %242 = vmatpush.msra.mxu0 0.0
    %243 = vmatpush.msra.mxu0 0.0
    %244 = vmatpush.msra.mxu0 %v130
    %245 = vmatpush.msra.mxu0 %v129
    %246 = vmatpush.msra.mxu0 %v128
    %247 = vmatpush.msra.mxu0 %v127
    %248 = vmatmul.f32.gmra.mxu0 %v137
    %v249 = vpop.f32.mrf.mxu0
    %v250 = vadd.f32 %v133, %v249
    %251 = vmatmul.f32.gmra.mxu0 %v140
    %v252 = vpop.f32.mrf.mxu0
    %v253 = vadd.f32 %v133, %v252
    %254 = vmatmul.f32.gmra.mxu0 %v143
    %v255 = vpop.f32.mrf.mxu0
    %v256 = vadd.f32 %v133, %v255
    %257 = vmatmul.f32.gmra.mxu0 %v146
    %v258 = vpop.f32.mrf.mxu0
    %v259 = vadd.f32 %v133, %v258
    %260 = vmatmul.f32.gmra.mxu0 %v149
    %v261 = vpop.f32.mrf.mxu0
    %v262 = vadd.f32 %v133, %v261
    %263 = vmatmul.f32.gmra.mxu0 %v152
    %v264 = vpop.f32.mrf.mxu0
    %v265 = vadd.f32 %v133, %v264
    %266 = vmatmul.f32.gmra.mxu0 %v155
    %v267 = vpop.f32.mrf.mxu0
    %v268 = vadd.f32 %v133, %v267
    %269 = vmatmul.f32.gmra.mxu0 %v158
    %v270 = vpop.f32.mrf.mxu0
    %v271 = vadd.f32 %v133, %v270
    %272 = vmatmul.f32.gmra.mxu0 %v161
    %v273 = vpop.f32.mrf.mxu0
    %v274 = vadd.f32 %v133, %v273
    %275 = vmatmul.f32.gmra.mxu0 %v164
    %v276 = vpop.f32.mrf.mxu0
    %v277 = vadd.f32 %v133, %v276
    %278 = vmatmul.f32.gmra.mxu0 %v167
    %v279 = vpop.f32.mrf.mxu0
    %v280 = vadd.f32 %v133, %v279
    %281 = vmatmul.f32.gmra.mxu0 %v170
    %v282 = vpop.f32.mrf.mxu0
    %v283 = vadd.f32 %v133, %v282
    %284 = vmatmul.f32.gmra.mxu0 %v173
    %v285 = vpop.f32.mrf.mxu0
    %v286 = vadd.f32 %v133, %v285
    %287 = vmatmul.f32.gmra.mxu0 %v176
    %v288 = vpop.f32.mrf.mxu0
    %v289 = vadd.f32 %v133, %v288
    %290 = vmatmul.f32.gmra.mxu0 %v179
    %v291 = vpop.f32.mrf.mxu0
    %v292 = vadd.f32 %v133, %v291
    %293 = vmatmul.f32.gmra.mxu0 %v182
    %v294 = vpop.f32.mrf.mxu0
    %v295 = vadd.f32 %v133, %v294
    %296 = vmatmul.f32.gmra.mxu0 %v185
    %v297 = vpop.f32.mrf.mxu0
    %v298 = vadd.f32 %v133, %v297
    %299 = vmatmul.f32.gmra.mxu0 %v188
    %v300 = vpop.f32.mrf.mxu0
    %v301 = vadd.f32 %v133, %v300
    %302 = vmatmul.f32.gmra.mxu0 %v191
    %v303 = vpop.f32.mrf.mxu0
    %v304 = vadd.f32 %v133, %v303
    %305 = vmatmul.f32.gmra.mxu0 %v194
    %v306 = vpop.f32.mrf.mxu0
    %v307 = vadd.f32 %v133, %v306
    %308 = vmatmul.f32.gmra.mxu0 %v197
    %v309 = vpop.f32.mrf.mxu0
    %v310 = vadd.f32 %v133, %v309
    %311 = vmatmul.f32.gmra.mxu0 %v200
    %v312 = vpop.f32.mrf.mxu0
    %v313 = vadd.f32 %v133, %v312
    %314 = vmatmul.f32.gmra.mxu0 %v203
    %v315 = vpop.f32.mrf.mxu0
    %v316 = vadd.f32 %v133, %v315
    %317 = vmatmul.f32.gmra.mxu0 %v206
    %v318 = vpop.f32.mrf.mxu0
    %v319 = vadd.f32 %v133, %v318
    %320 = vmatmul.f32.gmra.mxu0 %v209
    %v321 = vpop.f32.mrf.mxu0
    %v322 = vadd.f32 %v133, %v321
    %323 = vmatmul.f32.gmra.mxu0 %v212
    %v324 = vpop.f32.mrf.mxu0
    %v325 = vadd.f32 %v133, %v324
    %326 = vmatmul.f32.gmra.mxu0 %v215
    %v327 = vpop.f32.mrf.mxu0
    %v328 = vadd.f32 %v133, %v327
    %329 = vmatmul.f32.gmra.mxu0 %v218
    %v330 = vpop.f32.mrf.mxu0
    %v331 = vadd.f32 %v133, %v330
    %332 = vmatmul.f32.gmra.mxu0 %v221
    %v333 = vpop.f32.mrf.mxu0
    %v334 = vadd.f32 %v133, %v333
    %335 = vmatmul.f32.gmra.mxu0 %v224
    %v336 = vpop.f32.mrf.mxu0
    %v337 = vadd.f32 %v133, %v336
    %338 = vmatmul.f32.gmra.mxu0 %v227
    %v339 = vpop.f32.mrf.mxu0
    %v340 = vadd.f32 %v133, %v339
    %341 = vmatmul.f32.gmra.mxu0 %v230
    %v342 = vpop.f32.mrf.mxu0
    %v343 = vadd.f32 %v133, %v342
    %344 = vdwg.mxu0
    %v345 = vmax.f32 %v250, 0.0
    %v346 = vmax.f32 %v253, 0.0
    %v347 = vmax.f32 %v256, 0.0
    %v348 = vmax.f32 %v259, 0.0
    %v349 = vmax.f32 %v262, 0.0
    %v350 = vmax.f32 %v265, 0.0
    %v351 = vmax.f32 %v268, 0.0
    %v352 = vmax.f32 %v271, 0.0
    %v353 = vmax.f32 %v274, 0.0
    %v354 = vmax.f32 %v277, 0.0
    %v355 = vmax.f32 %v280, 0.0
    %v356 = vmax.f32 %v283, 0.0
    %v357 = vmax.f32 %v286, 0.0
    %v358 = vmax.f32 %v289, 0.0
    %v359 = vmax.f32 %v292, 0.0
    %v360 = vmax.f32 %v295, 0.0
    %v361 = vmax.f32 %v298, 0.0
    %v362 = vmax.f32 %v301, 0.0
    %v363 = vmax.f32 %v304, 0.0
    %v364 = vmax.f32 %v307, 0.0
    %v365 = vmax.f32 %v310, 0.0
    %v366 = vmax.f32 %v313, 0.0
    %v367 = vmax.f32 %v316, 0.0
    %v368 = vmax.f32 %v319, 0.0
    %v369 = vmax.f32 %v322, 0.0
    %v370 = vmax.f32 %v325, 0.0
    %v371 = vmax.f32 %v328, 0.0
    %v372 = vmax.f32 %v331, 0.0
    %v373 = vmax.f32 %v334, 0.0
    %v374 = vmax.f32 %v337, 0.0
    %v375 = vmax.f32 %v340, 0.0
    %v376 = vmax.f32 %v343, 0.0
    %v377 = vld [vmem:[%s4] sm:$0xff]
    %v378 = vld [vmem:[%s4 + $0x8] sm:$0xff]
    %v379 = vld [vmem:[%s4 + $0x10] sm:$0xff]
    %v380 = vld [vmem:[%s4 + $0x18] sm:$0xff]
    %v381 = vld [vmem:[%s4 + $0x20] sm:$0xff]
    %v382 = vld [vmem:[%s4 + $0x28] sm:$0xff]
    %v383 = vld [vmem:[%s4 + $0x30] sm:$0xff]
    %v384 = vld [vmem:[%s4 + $0x38] sm:$0xff]
    %v385 = vld [vmem:[%s5] sm:$0x1]
    %v387 = vperm.slane %v385, 0
    %vm389 = vcmask 523264
    %v391 = vsel %vm389, %v345, 0
    %v394 = vsel %vm389, %v346, 0
    %v397 = vsel %vm389, %v347, 0
    %v400 = vsel %vm389, %v348, 0
    %v403 = vsel %vm389, %v349, 0
    %v406 = vsel %vm389, %v350, 0
    %v409 = vsel %vm389, %v351, 0
    %v412 = vsel %vm389, %v352, 0
    %v415 = vsel %vm389, %v353, 0
    %v418 = vsel %vm389, %v354, 0
    %v421 = vsel %vm389, %v355, 0
    %v424 = vsel %vm389, %v356, 0
    %v427 = vsel %vm389, %v357, 0
    %v430 = vsel %vm389, %v358, 0
    %v433 = vsel %vm389, %v359, 0
    %v436 = vsel %vm389, %v360, 0
    %v439 = vsel %vm389, %v361, 0
    %v442 = vsel %vm389, %v362, 0
    %v445 = vsel %vm389, %v363, 0
    %v448 = vsel %vm389, %v364, 0
    %v451 = vsel %vm389, %v365, 0
    %v454 = vsel %vm389, %v366, 0
    %v457 = vsel %vm389, %v367, 0
    %v460 = vsel %vm389, %v368, 0
    %v463 = vsel %vm389, %v369, 0
    %v466 = vsel %vm389, %v370, 0
    %v469 = vsel %vm389, %v371, 0
    %v472 = vsel %vm389, %v372, 0
    %v475 = vsel %vm389, %v373, 0
    %v478 = vsel %vm389, %v374, 0
    %v481 = vsel %vm389, %v375, 0
    %v484 = vsel %vm389, %v376, 0
    %486 = vmatpush.msra.mxu0 0.0
    %487 = vmatpush.msra.mxu0 0.0
    %488 = vmatpush.msra.mxu0 0.0
    %489 = vmatpush.msra.mxu0 0.0
    %490 = vmatpush.msra.mxu0 0.0
    %491 = vmatpush.msra.mxu0 0.0
    %492 = vmatpush.msra.mxu0 0.0
    %493 = vmatpush.msra.mxu0 0.0
    %494 = vmatpush.msra.mxu0 %v384
    %495 = vmatpush.msra.mxu0 %v383
    %496 = vmatpush.msra.mxu0 %v382
    %497 = vmatpush.msra.mxu0 %v381
    %498 = vmatpush.msra.mxu0 %v380
    %499 = vmatpush.msra.mxu0 %v379
    %500 = vmatpush.msra.mxu0 %v378
    %501 = vmatpush.msra.mxu0 %v377
    %502 = vmatmul.f32.gmra.mxu0 %v391
    %v503 = vpop.f32.mrf.mxu0
    %v504 = vadd.f32 %v387, %v503
    %505 = vmatmul.f32.gmra.mxu0 %v394
    %v506 = vpop.f32.mrf.mxu0
    %v507 = vadd.f32 %v387, %v506
    %508 = vmatmul.f32.gmra.mxu0 %v397
    %v509 = vpop.f32.mrf.mxu0
    %v510 = vadd.f32 %v387, %v509
    %511 = vmatmul.f32.gmra.mxu0 %v400
    %v512 = vpop.f32.mrf.mxu0
    %v513 = vadd.f32 %v387, %v512
    %514 = vmatmul.f32.gmra.mxu0 %v403
    %v515 = vpop.f32.mrf.mxu0
    %v516 = vadd.f32 %v387, %v515
    %517 = vmatmul.f32.gmra.mxu0 %v406
    %v518 = vpop.f32.mrf.mxu0
    %v519 = vadd.f32 %v387, %v518
    %520 = vmatmul.f32.gmra.mxu0 %v409
    %v521 = vpop.f32.mrf.mxu0
    %v522 = vadd.f32 %v387, %v521
    %523 = vmatmul.f32.gmra.mxu0 %v412
    %v524 = vpop.f32.mrf.mxu0
    %v525 = vadd.f32 %v387, %v524
    %526 = vmatmul.f32.gmra.mxu0 %v415
    %v527 = vpop.f32.mrf.mxu0
    %v528 = vadd.f32 %v387, %v527
    %529 = vmatmul.f32.gmra.mxu0 %v418
    %v530 = vpop.f32.mrf.mxu0
    %v531 = vadd.f32 %v387, %v530
    %532 = vmatmul.f32.gmra.mxu0 %v421
    %v533 = vpop.f32.mrf.mxu0
    %v534 = vadd.f32 %v387, %v533
    %535 = vmatmul.f32.gmra.mxu0 %v424
    %v536 = vpop.f32.mrf.mxu0
    %v537 = vadd.f32 %v387, %v536
    %538 = vmatmul.f32.gmra.mxu0 %v427
    %v539 = vpop.f32.mrf.mxu0
    %v540 = vadd.f32 %v387, %v539
    %541 = vmatmul.f32.gmra.mxu0 %v430
    %v542 = vpop.f32.mrf.mxu0
    %v543 = vadd.f32 %v387, %v542
    %544 = vmatmul.f32.gmra.mxu0 %v433
    %v545 = vpop.f32.mrf.mxu0
    %v546 = vadd.f32 %v387, %v545
    %547 = vmatmul.f32.gmra.mxu0 %v436
    %v548 = vpop.f32.mrf.mxu0
    %v549 = vadd.f32 %v387, %v548
    %550 = vmatmul.f32.gmra.mxu0 %v439
    %v551 = vpop.f32.mrf.mxu0
    %v552 = vadd.f32 %v387, %v551
    %553 = vmatmul.f32.gmra.mxu0 %v442
    %v554 = vpop.f32.mrf.mxu0
    %v555 = vadd.f32 %v387, %v554
    %556 = vmatmul.f32.gmra.mxu0 %v445
    %v557 = vpop.f32.mrf.mxu0
    %v558 = vadd.f32 %v387, %v557
    %559 = vmatmul.f32.gmra.mxu0 %v448
    %v560 = vpop.f32.mrf.mxu0
    %v561 = vadd.f32 %v387, %v560
    %562 = vmatmul.f32.gmra.mxu0 %v451
    %v563 = vpop.f32.mrf.mxu0
    %v564 = vadd.f32 %v387, %v563
    %565 = vmatmul.f32.gmra.mxu0 %v454
    %v566 = vpop.f32.mrf.mxu0
    %v567 = vadd.f32 %v387, %v566
    %568 = vmatmul.f32.gmra.mxu0 %v457
    %v569 = vpop.f32.mrf.mxu0
    %v570 = vadd.f32 %v387, %v569
    %571 = vmatmul.f32.gmra.mxu0 %v460
    %v572 = vpop.f32.mrf.mxu0
    %v573 = vadd.f32 %v387, %v572
    %574 = vmatmul.f32.gmra.mxu0 %v463
    %v575 = vpop.f32.mrf.mxu0
    %v576 = vadd.f32 %v387, %v575
    %577 = vmatmul.f32.gmra.mxu0 %v466
    %v578 = vpop.f32.mrf.mxu0
    %v579 = vadd.f32 %v387, %v578
    %580 = vmatmul.f32.gmra.mxu0 %v469
    %v581 = vpop.f32.mrf.mxu0
    %v582 = vadd.f32 %v387, %v581
    %583 = vmatmul.f32.gmra.mxu0 %v472
    %v584 = vpop.f32.mrf.mxu0
    %v585 = vadd.f32 %v387, %v584
    %586 = vmatmul.f32.gmra.mxu0 %v475
    %v587 = vpop.f32.mrf.mxu0
    %v588 = vadd.f32 %v387, %v587
    %589 = vmatmul.f32.gmra.mxu0 %v478
    %v590 = vpop.f32.mrf.mxu0
    %v591 = vadd.f32 %v387, %v590
    %592 = vmatmul.f32.gmra.mxu0 %v481
    %v593 = vpop.f32.mrf.mxu0
    %v594 = vadd.f32 %v387, %v593
    %595 = vmatmul.f32.gmra.mxu0 %v484
    %v596 = vpop.f32.mrf.mxu0
    %v597 = vadd.f32 %v387, %v596
    %598 = vdwg.mxu0
    %v599 = vmax.f32 %v504, 0.0
    %v600 = vmax.f32 %v507, 0.0
    %v601 = vmax.f32 %v510, 0.0
    %v602 = vmax.f32 %v513, 0.0
    %v603 = vmax.f32 %v516, 0.0
    %v604 = vmax.f32 %v519, 0.0
    %v605 = vmax.f32 %v522, 0.0
    %v606 = vmax.f32 %v525, 0.0
    %v607 = vmax.f32 %v528, 0.0
    %v608 = vmax.f32 %v531, 0.0
    %v609 = vmax.f32 %v534, 0.0
    %v610 = vmax.f32 %v537, 0.0
    %v611 = vmax.f32 %v540, 0.0
    %v612 = vmax.f32 %v543, 0.0
    %v613 = vmax.f32 %v546, 0.0
    %v614 = vmax.f32 %v549, 0.0
    %v615 = vmax.f32 %v552, 0.0
    %v616 = vmax.f32 %v555, 0.0
    %v617 = vmax.f32 %v558, 0.0
    %v618 = vmax.f32 %v561, 0.0
    %v619 = vmax.f32 %v564, 0.0
    %v620 = vmax.f32 %v567, 0.0
    %v621 = vmax.f32 %v570, 0.0
    %v622 = vmax.f32 %v573, 0.0
    %v623 = vmax.f32 %v576, 0.0
    %v624 = vmax.f32 %v579, 0.0
    %v625 = vmax.f32 %v582, 0.0
    %v626 = vmax.f32 %v585, 0.0
    %v627 = vmax.f32 %v588, 0.0
    %v628 = vmax.f32 %v591, 0.0
    %v629 = vmax.f32 %v594, 0.0
    %v630 = vmax.f32 %v597, 0.0
    %v631 = vld [vmem:[%s6] sm:$0x1]
    %s632 = sld [smem:[#allocation2]]
    %v633 = vstv %s632
    %v635 = vsel %vm389, %v631, 0
    %v638 = vsel %vm389, %v599, 0
    %v641 = vsel %vm389, %v600, 0
    %v644 = vsel %vm389, %v601, 0
    %v647 = vsel %vm389, %v602, 0
    %v650 = vsel %vm389, %v603, 0
    %v653 = vsel %vm389, %v604, 0
    %v656 = vsel %vm389, %v605, 0
    %v659 = vsel %vm389, %v606, 0
    %v662 = vsel %vm389, %v607, 0
    %v665 = vsel %vm389, %v608, 0
    %v668 = vsel %vm389, %v609, 0
    %v671 = vsel %vm389, %v610, 0
    %v674 = vsel %vm389, %v611, 0
    %v677 = vsel %vm389, %v612, 0
    %v680 = vsel %vm389, %v613, 0
    %v683 = vsel %vm389, %v614, 0
    %v686 = vsel %vm389, %v615, 0
    %v689 = vsel %vm389, %v616, 0
    %v692 = vsel %vm389, %v617, 0
    %v695 = vsel %vm389, %v618, 0
    %v698 = vsel %vm389, %v619, 0
    %v701 = vsel %vm389, %v620, 0
    %v704 = vsel %vm389, %v621, 0
    %v707 = vsel %vm389, %v622, 0
    %v710 = vsel %vm389, %v623, 0
    %v713 = vsel %vm389, %v624, 0
    %v716 = vsel %vm389, %v625, 0
    %v719 = vsel %vm389, %v626, 0
    %v722 = vsel %vm389, %v627, 0
    %v725 = vsel %vm389, %v628, 0
    %v728 = vsel %vm389, %v629, 0
    %v731 = vsel %vm389, %v630, 0
    %733 = vmatpush.xpose.msra.mxu0 %v683
    %734 = vmatpush.xpose.msra.mxu0 %v680
    %735 = vmatpush.xpose.msra.mxu0 %v677
    %736 = vmatpush.xpose.msra.mxu0 %v674
    %737 = vmatpush.xpose.msra.mxu0 %v671
    %738 = vmatpush.xpose.msra.mxu0 %v668
    %739 = vmatpush.xpose.msra.mxu0 %v665
    %740 = vmatpush.xpose.msra.mxu0 %v662
    %741 = vmatpush.xpose.msra.mxu0 %v659
    %742 = vmatpush.xpose.msra.mxu0 %v656
    %743 = vmatpush.xpose.msra.mxu0 %v653
    %744 = vmatpush.xpose.msra.mxu0 %v650
    %745 = vmatpush.xpose.msra.mxu0 %v647
    %746 = vmatpush.xpose.msra.mxu0 %v644
    %747 = vmatpush.xpose.msra.mxu0 %v641
    %748 = vmatpush.xpose.msra.mxu0 %v638
    %749 = vmatmul.f32.gmra.mxu0 %v635
    %v750 = vpop.f32.mrf.mxu0
    %v751 = vadd.f32 %v633, %v750
    %752 = vdwg.mxu0
    %753 = vmatpush.xpose.msra.mxu0 %v731
    %754 = vmatpush.xpose.msra.mxu0 %v728
    %755 = vmatpush.xpose.msra.mxu0 %v725
    %756 = vmatpush.xpose.msra.mxu0 %v722
    %757 = vmatpush.xpose.msra.mxu0 %v719
    %758 = vmatpush.xpose.msra.mxu0 %v716
    %759 = vmatpush.xpose.msra.mxu0 %v713
    %760 = vmatpush.xpose.msra.mxu0 %v710
    %761 = vmatpush.xpose.msra.mxu0 %v707
    %762 = vmatpush.xpose.msra.mxu0 %v704
    %763 = vmatpush.xpose.msra.mxu0 %v701
    %764 = vmatpush.xpose.msra.mxu0 %v698
    %765 = vmatpush.xpose.msra.mxu0 %v695
    %766 = vmatpush.xpose.msra.mxu0 %v692
    %767 = vmatpush.xpose.msra.mxu0 %v689
    %768 = vmatpush.xpose.msra.mxu0 %v686
    %769 = vmatmul.f32.gmra.mxu0 %v635
    %v770 = vpop.f32.mrf.mxu0
    %v771 = vadd.f32 %v633, %v770
    %772 = vdwg.mxu0
    %v773 = vxor.u32 %v751, 2147483648
    %v774 = vxor.u32 %v771, 2147483648
    %v775 = vmul.f32 %v773, 1.442695
    %v776 = vpow.pop %v775
    %v777 = vmul.f32 %v774, 1.442695
    %v778 = vpow.pop %v777
    %v779 = vadd.f32 %v776, 1.0
    %v780 = vadd.f32 %v778, 1.0
    %v781 = vrcp.pop %v779
    %v782 = vmul.f32 %v779, %v781
    %v783 = vsub.f32 1.0, %v782
    %v784 = vmul.f32 %v781, %v783
    %v785 = vadd.f32 %v781, %v784
    %vm786 = vweird.f32 %v779
    %vm787 = vweird.f32 %v781
    %vm788 = vmor %vm786, %vm787
    %v789 = vsel %vm788, %v781, %v785
    %v790 = vand.u32 2147483647, %v779
    %vm791 = vcmp.eq.f32.partialorder %v790, 8.507059e+37
    %v792 = vand.u32 %v779, 2147483648
    %v793 = vor.u32 1.1754944e-38, %v792
    %v794 = vsel %vm791, %v793, %v789
    %v795 = vmul.f32 1.0, %v794
    %v796 = vrcp.pop %v780
    %v797 = vmul.f32 %v780, %v796
    %v798 = vsub.f32 1.0, %v797
    %v799 = vmul.f32 %v796, %v798
    %v800 = vadd.f32 %v796, %v799
    %vm801 = vweird.f32 %v780
    %vm802 = vweird.f32 %v796
    %vm803 = vmor %vm801, %vm802
    %v804 = vsel %vm803, %v796, %v800
    %v805 = vand.u32 2147483647, %v780
    %vm806 = vcmp.eq.f32.partialorder %v805, 8.507059e+37
    %v807 = vand.u32 %v780, 2147483648
    %v808 = vor.u32 1.1754944e-38, %v807
    %v809 = vsel %vm806, %v808, %v804
    %v810 = vmul.f32 1.0, %v809
    %v813 = vrot.slane %v810, 7
    %vm814 = vcmask 1040384
    %v815 = vsel %vm814, %v795, %v813
    %v817 = vlaneseq
    %vm818 = vcmp.ge.s32.totalorder %v817, 0
    %vm819 = vcmp.lt.s32.totalorder %v817, 256
    %vm820 = vmand %vm818, %vm819
    %821 = vst.msk [vmem:[#allocation3] sm:$0x3] %vm820, %v815
    // Predicated region
    $region34: #{tpu_custom_call.1} parent=1 // pred_check
      _
    $region35: #{tpu_custom_call.1} parent=1 // pred_check_branch
      %823 = sbr.rel (0) target = $region37
    $region36: #{tpu_custom_call.1} parent=1 // pred_region
      %825 = vsyncadd [#allocation4], 0
      %s827 = sshll.u32 [#allocation3], 4
      %s828 = int_to_ptr.vmem [resolvable:$true] %s827
      %s829 = sshll.u32 %s8, 4
      %s830 = int_to_ptr.hbm [resolvable:$true] %s829
      %832 = dma.vmem_to_hbm [thread:$0]  %s828, 32, %s830, [#allocation4]
    $region37: #{tpu_custom_call.1} parent=1 // pred_fallthru
      _
    // Predicated region
    $region38: #{tpu_custom_call.1} parent=1 // pred_check
      _
    $region39: #{tpu_custom_call.1} parent=1 // pred_check_branch
      %834 = sbr.rel (0) target = $region41
    $region40: #{tpu_custom_call.1} parent=1 // pred_region
      %836 = dma.done [#allocation4], 32
    $region41: #{tpu_custom_call.1} parent=1 // pred_fallthru
      _
    %837 = vsyncpa [#allocation4], 1

</llo_original>
